<compile_context>
chip_gen: v6e
topology: v6e:2x2x1
jax: 0.10.0
libtpu: 0.0.40
codegen_flags: <defaults>
</compile_context>

<pallas_src>
import functools

import jax
import jax.numpy as jnp
from jax.experimental import pallas as pl
from jax.experimental.pallas import tpu as pltpu


def _round_up(a, b):
    return ((a + b - 1) // b) * b


# ----------------------------- Pallas kernels ------------------------------


def _pchnet_loop_kernel(*refs, steps, eta, mu, use_bias, use_pred_tanh,
                        matmul_bf16):
    """Generic PCHNet step loop on one [TB, N] batch tile (handles bias/tanh)."""
    if use_bias:
        x_ref, w_ref, b_ref, o_ref = refs
    else:
        x_ref, w_ref, o_ref = refs
        b_ref = None

    mm_dtype = jnp.bfloat16 if matmul_bf16 else jnp.float32

    # At N = 128 the whole weight is only 8-16 vregs, so holding it is fine.
    # TODO(synk): for N >> 128 keep W as a VMEM ref and K-tile the dot instead
    # of materializing it into vregs here (avoids a spill-bound regime).
    w = w_ref[...].astype(mm_dtype)
    if use_bias:
        b = b_ref[...].astype(jnp.float32)  # shape (1, N)

    c = float(eta) - float(mu)
    x = x_ref[...].astype(jnp.float32)

    # Statically unrolled step loop: gives the scheduler cross-iteration
    # visibility (MXU push/pop overlaps the next iteration's VPU epilogue).
    for _ in range(steps):
        pred = jnp.dot(x.astype(mm_dtype), w,
                       preferred_element_type=jnp.float32)
        if use_bias:
            pred = pred + b
        if use_pred_tanh:
            pred = jnp.tanh(pred)
        # Folded update: eta*x - mu*(x - pred) == (eta-mu)*x + mu*pred.
        if c == 0.0 and float(mu) == 1.0:
            x = pred
        elif c == 0.0:
            x = float(mu) * pred
        else:
            x = c * x + float(mu) * pred
        # TODO(synk): actv_fn(x, step_i) hook (stochastic activations) is not
        # instantiated here; default config uses actv_fn=None.

    o_ref[...] = x.astype(o_ref.dtype)


def _pchnet_power_kernel(x_ref, m_ref, o_ref, *, steps, matmul_bf16):
    """Linear-config fast path: out = x0 @ M^steps via repeated squaring."""
    mm_dtype = jnp.bfloat16 if matmul_bf16 else jnp.float32

    def mm(a, b):
        return jnp.dot(a.astype(mm_dtype), b.astype(mm_dtype),
                       preferred_element_type=jnp.float32)

    # Binary exponentiation; `steps` is a static Python int so this unrolls at
    # trace time into ~log2(steps) full-tile MXU matmuls.
    base = m_ref[...].astype(jnp.float32)
    result = None
    e = int(steps)
    while e > 0:
        if e & 1:
            result = base if result is None else mm(result, base)
        e >>= 1
        if e:
            base = mm(base, base)

    x = x_ref[...].astype(jnp.float32)
    o_ref[...] = mm(x, result).astype(o_ref.dtype)


# ------------------------------ Host wrapper -------------------------------


def pchnet_forward(x, weight, bias=None, *, steps=10, eta=1.0, mu=1.0,
                   pred_actv_tanh=False, matmul_bf16=False,
                   use_power_form=None, block_b=None):
    """PCHNet.forward.  x: [B, N], weight: [N, N] (raw, asymmetric)."""
    B, N = x.shape
    assert weight.shape == (N, N)
    assert N % 128 == 0, "size must be a multiple of the 128-lane width"

    if steps == 0:
        return jnp.asarray(x)

    # weight_sym_upper property: symmetric, zero diagonal (parameter glue).
    w_upper = jnp.triu(weight, k=1)
    w_sym = (w_upper + w_upper.T).astype(jnp.float32)

    use_bias = bias is not None
    linear = (not use_bias) and (not pred_actv_tanh)
    if use_power_form is None:
        use_power_form = linear          # default fast path when valid
    if use_power_form and not linear:
        raise ValueError("power form only valid for bias=None, no pred tanh")

    eta = float(eta)
    mu = float(mu)
    mm_w_dtype = jnp.bfloat16 if matmul_bf16 else jnp.float32

    if use_power_form:
        # ---- linear fast path: single kernel computes x0 @ M^steps ----
        m = w_sym if mu == 1.0 else mu * w_sym
        if eta != mu:
            m = m + (eta - mu) * jnp.eye(N, dtype=jnp.float32)
        m = m.astype(mm_w_dtype)

        b_block = _round_up(B, 8)
        x_in = x
        if b_block != B:
            x_in = jnp.zeros((b_block, N), x.dtype).at[:B].set(x)

        kernel = functools.partial(_pchnet_power_kernel, steps=int(steps),
                                   matmul_bf16=matmul_bf16)
        out = pl.pallas_call(
            kernel,
            out_shape=jax.ShapeDtypeStruct((b_block, N), x.dtype),
            grid_spec=pltpu.PrefetchScalarGridSpec(
                num_scalar_prefetch=0,
                grid=(1,),
                in_specs=[
                    pl.BlockSpec((b_block, N), lambda i: (0, 0)),  # x0
                    pl.BlockSpec((N, N), lambda i: (0, 0)),        # M
                ],
                out_specs=pl.BlockSpec((b_block, N), lambda i: (0, 0)),
            ),
            compiler_params=pltpu.CompilerParams(
                dimension_semantics=("arbitrary",)),
            input_output_aliases={0: 0},
        )(x_in, m)
        return out[:B] if b_block != B else out

    # ---- generic step-loop path (bias / tanh / forced) ----
    if block_b is None:
        block_b = min(_round_up(B, 8), 128)
    block_b = _round_up(int(block_b), 8)
    B_pad = _round_up(B, block_b)
    x_in = x
    if B_pad != B:
        x_in = jnp.zeros((B_pad, N), x.dtype).at[:B].set(x)
    num_blocks = B_pad // block_b

    w_pass = w_sym.astype(mm_w_dtype)

    in_specs = [
        pl.BlockSpec((block_b, N), lambda i: (i, 0)),   # x state tile
        pl.BlockSpec((N, N), lambda i: (0, 0)),         # symmetric weight
    ]
    operands = [x_in, w_pass]
    if use_bias:
        in_specs.append(pl.BlockSpec((1, N), lambda i: (0, 0)))
        operands.append(jnp.asarray(bias, jnp.float32).reshape(1, N))

    kernel = functools.partial(
        _pchnet_loop_kernel,
        steps=int(steps), eta=eta, mu=mu,
        use_bias=use_bias, use_pred_tanh=bool(pred_actv_tanh),
        matmul_bf16=matmul_bf16,
    )

    out = pl.pallas_call(
        kernel,
        out_shape=jax.ShapeDtypeStruct((B_pad, N), x.dtype),
        grid_spec=pltpu.PrefetchScalarGridSpec(
            num_scalar_prefetch=0,
            grid=(num_blocks,),
            in_specs=in_specs,
            out_specs=pl.BlockSpec((block_b, N), lambda i: (i, 0)),
        ),
        # Batch tiles are independent -> parallel grid axis (v7x megacore).
        compiler_params=pltpu.CompilerParams(
            dimension_semantics=("parallel",)),
        input_output_aliases={0: 0},
    )(*operands)
    return out[:B] if B_pad != B else out


# --------------------------- Pure-JAX reference ----------------------------


def pchnet_forward_ref(x, weight, bias=None, *, steps=10, eta=1.0, mu=1.0,
                       pred_actv_tanh=False):
    """Literal translation of PCHNet.forward (f32-accurate matmuls)."""
    w_upper = jnp.triu(weight, k=1)
    w_sym = w_upper + w_upper.T
    for _ in range(steps):
        pred = jnp.dot(x, w_sym, precision=jax.lax.Precision.HIGHEST)
        if bias is not None:
            pred = pred + bias
        if pred_actv_tanh:
            pred = jnp.tanh(pred)
        e = x - pred
        x = eta * x - mu * e
    return x


def _check(name, out, ref, rel_tol):
    err = float(jnp.max(jnp.abs(out - ref)))
    scale = float(jnp.max(jnp.abs(ref))) + 1e-6
    assert err <= rel_tol * scale, (
        f"{name}: rel err {err / scale:.3e} > {rel_tol} (abs err {err:.3e})")


# ---------------------------------- Main -----------------------------------


if __name__ == "__main__":
    B = 16         # batch_size
    N = 128        # size (number of neurons)
    STEPS = 10     # default number of steps

    key = jax.random.PRNGKey(0)
    k_x, k_w, k_b = jax.random.split(key, 3)

    # Deterministic xavier_uniform-style init: bound = sqrt(6 / (2*N)).
    bound = (6.0 / (2.0 * N)) ** 0.5
    weight = jax.random.uniform(k_w, (N, N), jnp.float32, -bound, bound)
    x = jax.random.normal(k_x, (B, N), jnp.float32)
    bias_vec = 0.1 * jax.random.normal(k_b, (N,), jnp.float32)

    # 1) Default config (bias=None, no tanh, eta=mu=1): linear -> power-form
    #    kernel (repeated squaring of M, single batched matmul).
    ref = pchnet_forward_ref(x, weight, steps=STEPS)
    out = jax.block_until_ready(pchnet_forward(x, weight, steps=STEPS))
    assert out.shape == (B, N) and out.dtype == jnp.float32
    _check("power_f32", out, ref, 1e-3)

    # 2) Same config through the generic unrolled step-loop kernel with a
    #    parallel batch grid (block_b=8 -> grid=(2,)).
    out_loop = jax.block_until_ready(
        pchnet_forward(x, weight, steps=STEPS, use_power_form=False,
                       block_b=8))
    _check("loop_f32", out_loop, ref, 1e-3)

    # 3) Non-linear config: bias + tanh + eta/mu != 1 (forces loop kernel).
    ref_nl = pchnet_forward_ref(x, weight, bias_vec, steps=STEPS,
                                eta=0.9, mu=0.5, pred_actv_tanh=True)
    out_nl = jax.block_until_ready(
        pchnet_forward(x, weight, bias_vec, steps=STEPS, eta=0.9, mu=0.5,
                       pred_actv_tanh=True))
    _check("loop_bias_tanh_f32", out_nl, ref_nl, 2e-2)

    # 4) bf16 MXU operands (f32 accumulation) on the default config.
    out_bf16 = jax.block_until_ready(
        pchnet_forward(x, weight, steps=STEPS, matmul_bf16=True))
    _check("power_bf16", out_bf16, ref, 5e-2)

    print("KERNEL_OK")
</pallas_src>

<mosaic_0001>
module attributes {stable_mosaic.version = 11 : i64} {
  func.func @_pchnet_power_kernel(%arg0: i32, %arg1: memref<16x128xf32, #tpu.memory_space<vmem>>, %arg2: memref<128x128xf32, #tpu.memory_space<vmem>>, %arg3: memref<16x128xf32, #tpu.memory_space<vmem>>) attributes {dimension_semantics = [#tpu.dimension_semantics<arbitrary>], iteration_bounds = array<i64: 1>, scalar_prefetch = 0 : i64, scratch_operands = 0 : i64, tpu.core_type = #tpu.core_type<tc>, window_params = [{pipeline_mode = #tpu.pipeline_mode<synchronous>, transform_indices = @transform_0, window_bounds = array<i64: 16, 128>}, {pipeline_mode = #tpu.pipeline_mode<synchronous>, transform_indices = @transform_1, window_bounds = array<i64: 128, 128>}, {pipeline_mode = #tpu.pipeline_mode<synchronous>, transform_indices = @transform_2, window_bounds = array<i64: 16, 128>}]} {
    %c0 = arith.constant 0 : index
    %c0_0 = arith.constant 0 : index
    %0 = vector.load %arg2[%c0, %c0_0] : memref<128x128xf32, #tpu.memory_space<vmem>>, vector<128x128xf32>
    %cst = arith.constant dense<0.000000e+00> : vector<128x128xf32>
    %1 = tpu.matmul %0, %0, %cst {dimension_numbers = #tpu.dot_dimension_numbers<[1], [0], [0], [1], [0, 0, 1, 1], [], []>} : vector<128x128xf32>, vector<128x128xf32>, vector<128x128xf32> -> vector<128x128xf32>
    %cst_1 = arith.constant dense<0.000000e+00> : vector<128x128xf32>
    %2 = tpu.matmul %1, %1, %cst_1 {dimension_numbers = #tpu.dot_dimension_numbers<[1], [0], [0], [1], [0, 0, 1, 1], [], []>} : vector<128x128xf32>, vector<128x128xf32>, vector<128x128xf32> -> vector<128x128xf32>
    %cst_2 = arith.constant dense<0.000000e+00> : vector<128x128xf32>
    %3 = tpu.matmul %2, %2, %cst_2 {dimension_numbers = #tpu.dot_dimension_numbers<[1], [0], [0], [1], [0, 0, 1, 1], [], []>} : vector<128x128xf32>, vector<128x128xf32>, vector<128x128xf32> -> vector<128x128xf32>
    %cst_3 = arith.constant dense<0.000000e+00> : vector<128x128xf32>
    %4 = tpu.matmul %1, %3, %cst_3 {dimension_numbers = #tpu.dot_dimension_numbers<[1], [0], [0], [1], [0, 0, 1, 1], [], []>} : vector<128x128xf32>, vector<128x128xf32>, vector<128x128xf32> -> vector<128x128xf32>
    %c0_4 = arith.constant 0 : index
    %c0_5 = arith.constant 0 : index
    %5 = vector.load %arg1[%c0_4, %c0_5] : memref<16x128xf32, #tpu.memory_space<vmem>>, vector<16x128xf32>
    %cst_6 = arith.constant dense<0.000000e+00> : vector<16x128xf32>
    %6 = tpu.matmul %5, %4, %cst_6 {dimension_numbers = #tpu.dot_dimension_numbers<[1], [0], [0], [1], [0, 0, 1, 1], [], []>} : vector<16x128xf32>, vector<128x128xf32>, vector<16x128xf32> -> vector<16x128xf32>
    %c0_7 = arith.constant 0 : index
    %c0_8 = arith.constant 0 : index
    %7 = vector.load %arg3[%c0_7, %c0_8] : memref<16x128xf32, #tpu.memory_space<vmem>>, vector<16x128xf32>
    tpu.vector_store %arg3[%c0_7, %c0_8], %6 {strides = array<i32>} : memref<16x128xf32, #tpu.memory_space<vmem>>, vector<16x128xf32>,
    return
  }
  func.func @transform_0(%arg0: i32) -> (i32, i32) {
    %c0_i32 = arith.constant 0 : i32
    %c0_i32_0 = arith.constant 0 : i32
    %c0_i32_1 = arith.constant 0 : i32
    return %c0_i32, %c0_i32_0 : i32, i32
  }
  func.func @transform_1(%arg0: i32) -> (i32, i32) {
    %c0_i32 = arith.constant 0 : i32
    %c0_i32_0 = arith.constant 0 : i32
    %c0_i32_1 = arith.constant 0 : i32
    return %c0_i32, %c0_i32_0 : i32, i32
  }
  func.func @transform_2(%arg0: i32) -> (i32, i32) {
    %c0_i32 = arith.constant 0 : i32
    %c0_i32_0 = arith.constant 0 : i32
    %c0_i32_1 = arith.constant 0 : i32
    return %c0_i32, %c0_i32_0 : i32, i32
  }
}

</mosaic_0001>

<llo_original>
// kernel: tpu_custom_call.1
$region0: #{tpu_custom_call.1}
  #allocation0 [shape = 'u32[]', space=smem, size = 0x4, offset = 0x4, fixed_abs, tag = 'smem constant byte address 0x4 - core index']
  #allocation1 [shape = 'u32[144,128]{1,0:T(1,128)}', space=vmem, size = 0x12000, scoped, tag = 'internal scratch']
  %s0 = inlined_call_operand.hbm [shape: f32[16,128], index: 0, kind: input, shape index: {}, may-alias: {0,2}]
  %s1 = inlined_call_operand.hbm [shape: f32[128,128], index: 1, kind: input, shape index: {}]
  %s2 = inlined_call_operand.hbm [shape: f32[16,128], index: 2, kind: output, shape index: {}, may-alias: {0,2}]
  %s3 = sld [smem:[#allocation0]]
  $region26: #{tpu_custom_call.1} parent=0
    _
  %s5 = ssub.s32 1, %s3
  %s6 = scalar_select 0, %s5, %s3
  $region1: #{tpu_custom_call.1} parent=0
    #allocation2 [shape = 'u8[8192]{0}', space=vmem, size = 0x2000, scoped, tag = 'input window, operand 0, single buffered']
    #allocation3 [shape = 's32[1]{0}', space=sflag, size = 0x4, scoped, tag = 'scoped memory for tpu_custom_call.1']
    #allocation4 [shape = 's32[1]{0}', space=sflag, size = 0x4, scoped, tag = 'scoped memory for tpu_custom_call.1']
    #allocation5 [shape = 'u8[65536]{0}', space=vmem, size = 0x10000, scoped, tag = 'input window, operand 1, single buffered']
    #allocation6 [shape = 's32[1]{0}', space=sflag, size = 0x4, scoped, tag = 'scoped memory for tpu_custom_call.1']
    #allocation7 [shape = 'u8[8192]{0}', space=vmem, size = 0x2000, scoped, tag = 'output window, operand 0, single buffered']
    %7 = vsyncpa [#allocation3], 0
    %8 = vsyncpa [#allocation6], 0
    %9 = vsyncpa [#allocation4], 0
    // Predicated region
    $region2: #{tpu_custom_call.1} parent=1 // pred_check
      _
    $region3: #{tpu_custom_call.1} parent=1 // pred_check_branch
      %11 = sbr.rel (0) target = $region5
    $region4: #{tpu_custom_call.1} parent=1 // pred_region
      %s13 = ssub.s32 256, 256
      %14 = vsyncadd [#allocation3], %s13
      %s15 = sshll.u32 [#allocation2], 4
      %s16 = int_to_ptr.vmem [resolvable:$true] %s15
      %21 = dma.hbm_to_vmem [thread:$0]  %s0, 256, %s16, [#allocation3], 128, 128, 8
    $region5: #{tpu_custom_call.1} parent=1 // pred_fallthru
      _
    // Predicated region
    $region6: #{tpu_custom_call.1} parent=1 // pred_check
      _
    $region7: #{tpu_custom_call.1} parent=1 // pred_check_branch
      %23 = sbr.rel (0) target = $region9
    $region8: #{tpu_custom_call.1} parent=1 // pred_region
      %s25 = ssub.s32 2048, 2048
      %26 = vsyncadd [#allocation6], %s25
      %s27 = sshll.u32 [#allocation5], 4
      %s28 = int_to_ptr.vmem [resolvable:$true] %s27
      %33 = dma.hbm_to_vmem [thread:$0]  %s1, 2048, %s28, [#allocation6], 128, 128, 8
    $region9: #{tpu_custom_call.1} parent=1 // pred_fallthru
      _
    // Predicated region
    $region10: #{tpu_custom_call.1} parent=1 // pred_check
      _
    $region11: #{tpu_custom_call.1} parent=1 // pred_check_branch
      %35 = sbr.rel (0) target = $region13
    $region12: #{tpu_custom_call.1} parent=1 // pred_region
      %36 = dma.done [#allocation3], 256
    $region13: #{tpu_custom_call.1} parent=1 // pred_fallthru
      _
    // Predicated region
    $region14: #{tpu_custom_call.1} parent=1 // pred_check
      _
    $region15: #{tpu_custom_call.1} parent=1 // pred_check_branch
      %38 = sbr.rel (0) target = $region17
    $region16: #{tpu_custom_call.1} parent=1 // pred_region
      %39 = dma.done [#allocation6], 2048
    $region17: #{tpu_custom_call.1} parent=1 // pred_fallthru
      _
    %v40 = vld [vmem:[#allocation5] sm:$0xff]
    %v41 = vld [vmem:[#allocation5 + $0x8] sm:$0xff]
    %v42 = vld [vmem:[#allocation5 + $0x10] sm:$0xff]
    %v43 = vld [vmem:[#allocation5 + $0x18] sm:$0xff]
    %v44 = vld [vmem:[#allocation5 + $0x20] sm:$0xff]
    %v45 = vld [vmem:[#allocation5 + $0x28] sm:$0xff]
    %v46 = vld [vmem:[#allocation5 + $0x30] sm:$0xff]
    %v47 = vld [vmem:[#allocation5 + $0x38] sm:$0xff]
    %v48 = vld [vmem:[#allocation5 + $0x40] sm:$0xff]
    %v49 = vld [vmem:[#allocation5 + $0x48] sm:$0xff]
    %v50 = vld [vmem:[#allocation5 + $0x50] sm:$0xff]
    %v51 = vld [vmem:[#allocation5 + $0x58] sm:$0xff]
    %v52 = vld [vmem:[#allocation5 + $0x60] sm:$0xff]
    %v53 = vld [vmem:[#allocation5 + $0x68] sm:$0xff]
    %v54 = vld [vmem:[#allocation5 + $0x70] sm:$0xff]
    %v55 = vld [vmem:[#allocation5 + $0x78] sm:$0xff]
    %56 = vmatprep.subr.mxu0 0.0
    %57 = vmatpush1.msra.mxu0 %v55
    %58 = vmatprep.subr.mxu0 0.0
    %59 = vmatpush1.msra.mxu0 %v54
    %60 = vmatprep.subr.mxu0 0.0
    %61 = vmatpush1.msra.mxu0 %v53
    %62 = vmatprep.subr.mxu0 0.0
    %63 = vmatpush1.msra.mxu0 %v52
    %64 = vmatprep.subr.mxu0 0.0
    %65 = vmatpush1.msra.mxu0 %v51
    %66 = vmatprep.subr.mxu0 0.0
    %67 = vmatpush1.msra.mxu0 %v50
    %68 = vmatprep.subr.mxu0 0.0
    %69 = vmatpush1.msra.mxu0 %v49
    %70 = vmatprep.subr.mxu0 0.0
    %71 = vmatpush1.msra.mxu0 %v48
    %72 = vmatprep.subr.mxu0 0.0
    %73 = vmatpush1.msra.mxu0 %v47
    %74 = vmatprep.subr.mxu0 0.0
    %75 = vmatpush1.msra.mxu0 %v46
    %76 = vmatprep.subr.mxu0 0.0
    %77 = vmatpush1.msra.mxu0 %v45
    %78 = vmatprep.subr.mxu0 0.0
    %79 = vmatpush1.msra.mxu0 %v44
    %80 = vmatprep.subr.mxu0 0.0
    %81 = vmatpush1.msra.mxu0 %v43
    %82 = vmatprep.subr.mxu0 0.0
    %83 = vmatpush1.msra.mxu0 %v42
    %84 = vmatprep.subr.mxu0 0.0
    %85 = vmatpush1.msra.mxu0 %v41
    %86 = vmatprep.subr.mxu0 0.0
    %87 = vmatpush1.msra.mxu0 %v40
    %88 = vmatprep.subr.mxu0 0.0
    %89 = vmatpush2.msra.mxu0 0.0
    %90 = vmatprep.subr.mxu0 0.0
    %91 = vmatpush2.msra.mxu0 0.0
    %92 = vmatprep.subr.mxu0 0.0
    %93 = vmatpush2.msra.mxu0 0.0
    %94 = vmatprep.subr.mxu0 0.0
    %95 = vmatpush2.msra.mxu0 0.0
    %96 = vmatprep.subr.mxu0 0.0
    %97 = vmatpush2.msra.mxu0 0.0
    %98 = vmatprep.subr.mxu0 0.0
    %99 = vmatpush2.msra.mxu0 0.0
    %100 = vmatprep.subr.mxu0 0.0
    %101 = vmatpush2.msra.mxu0 0.0
    %102 = vmatprep.subr.mxu0 0.0
    %103 = vmatpush2.msra.mxu0 0.0
    %104 = vmatprep.subr.mxu0 0.0
    %105 = vmatpush2.msra.mxu0 0.0
    %106 = vmatprep.subr.mxu0 0.0
    %107 = vmatpush2.msra.mxu0 0.0
    %108 = vmatprep.subr.mxu0 0.0
    %109 = vmatpush2.msra.mxu0 0.0
    %110 = vmatprep.subr.mxu0 0.0
    %111 = vmatpush2.msra.mxu0 0.0
    %112 = vmatprep.subr.mxu0 0.0
    %113 = vmatpush2.msra.mxu0 0.0
    %114 = vmatprep.subr.mxu0 0.0
    %115 = vmatpush2.msra.mxu0 0.0
    %116 = vmatprep.subr.mxu0 0.0
    %117 = vmatpush2.msra.mxu0 0.0
    %118 = vmatprep.subr.mxu0 0.0
    %119 = vmatpush2.msra.mxu0 0.0
    %120 = vmatprep.mubr.f32.mxu0 0.0
    %121 = vmatmul.mubr.f32.gmra.mxu0 %v40
    %v122 = vpop.f32.mrf.mxu0
    %v123 = vadd.f32 0.0, %v122
    %v124 = vpop.f32.mrf.mxu0
    %125 = vmatprep.mubr.f32.mxu0 0.0
    %126 = vmatmul.mubr.f32.gmra.mxu0 %v41
    %v127 = vpop.f32.mrf.mxu0
    %v128 = vadd.f32 0.0, %v127
    %v129 = vpop.f32.mrf.mxu0
    %130 = vmatprep.mubr.f32.mxu0 0.0
    %131 = vmatmul.mubr.f32.gmra.mxu0 %v42
    %v132 = vpop.f32.mrf.mxu0
    %v133 = vadd.f32 0.0, %v132
    %v134 = vpop.f32.mrf.mxu0
    %135 = vmatprep.mubr.f32.mxu0 0.0
    %136 = vmatmul.mubr.f32.gmra.mxu0 %v43
    %v137 = vpop.f32.mrf.mxu0
    %v138 = vadd.f32 0.0, %v137
    %v139 = vpop.f32.mrf.mxu0
    %140 = vmatprep.mubr.f32.mxu0 0.0
    %141 = vmatmul.mubr.f32.gmra.mxu0 %v44
    %v142 = vpop.f32.mrf.mxu0
    %v143 = vadd.f32 0.0, %v142
    %v144 = vpop.f32.mrf.mxu0
    %145 = vmatprep.mubr.f32.mxu0 0.0
    %146 = vmatmul.mubr.f32.gmra.mxu0 %v45
    %v147 = vpop.f32.mrf.mxu0
    %v148 = vadd.f32 0.0, %v147
    %v149 = vpop.f32.mrf.mxu0
    %150 = vmatprep.mubr.f32.mxu0 0.0
    %151 = vmatmul.mubr.f32.gmra.mxu0 %v46
    %v152 = vpop.f32.mrf.mxu0
    %v153 = vadd.f32 0.0, %v152
    %v154 = vpop.f32.mrf.mxu0
    %155 = vmatprep.mubr.f32.mxu0 0.0
    %156 = vmatmul.mubr.f32.gmra.mxu0 %v47
    %v157 = vpop.f32.mrf.mxu0
    %v158 = vadd.f32 0.0, %v157
    %v159 = vpop.f32.mrf.mxu0
    %160 = vmatprep.mubr.f32.mxu0 0.0
    %161 = vmatmul.mubr.f32.gmra.mxu0 %v48
    %v162 = vpop.f32.mrf.mxu0
    %v163 = vadd.f32 0.0, %v162
    %v164 = vpop.f32.mrf.mxu0
    %165 = vmatprep.mubr.f32.mxu0 0.0
    %166 = vmatmul.mubr.f32.gmra.mxu0 %v49
    %v167 = vpop.f32.mrf.mxu0
    %v168 = vadd.f32 0.0, %v167
    %v169 = vpop.f32.mrf.mxu0
    %170 = vmatprep.mubr.f32.mxu0 0.0
    %171 = vmatmul.mubr.f32.gmra.mxu0 %v50
    %v172 = vpop.f32.mrf.mxu0
    %v173 = vadd.f32 0.0, %v172
    %v174 = vpop.f32.mrf.mxu0
    %175 = vmatprep.mubr.f32.mxu0 0.0
    %176 = vmatmul.mubr.f32.gmra.mxu0 %v51
    %v177 = vpop.f32.mrf.mxu0
    %v178 = vadd.f32 0.0, %v177
    %v179 = vpop.f32.mrf.mxu0
    %180 = vmatprep.mubr.f32.mxu0 0.0
    %181 = vmatmul.mubr.f32.gmra.mxu0 %v52
    %v182 = vpop.f32.mrf.mxu0
    %v183 = vadd.f32 0.0, %v182
    %v184 = vpop.f32.mrf.mxu0
    %185 = vmatprep.mubr.f32.mxu0 0.0
    %186 = vmatmul.mubr.f32.gmra.mxu0 %v53
    %v187 = vpop.f32.mrf.mxu0
    %v188 = vadd.f32 0.0, %v187
    %v189 = vpop.f32.mrf.mxu0
    %190 = vmatprep.mubr.f32.mxu0 0.0
    %191 = vmatmul.mubr.f32.gmra.mxu0 %v54
    %v192 = vpop.f32.mrf.mxu0
    %v193 = vadd.f32 0.0, %v192
    %v194 = vpop.f32.mrf.mxu0
    %195 = vmatprep.mubr.f32.mxu0 0.0
    %196 = vmatmul.mubr.f32.gmra.mxu0 %v55
    %v197 = vpop.f32.mrf.mxu0
    %v198 = vadd.f32 0.0, %v197
    %v199 = vpop.f32.mrf.mxu0
    %200 = vdwg.mxu0
    %201 = vmatprep.subr.mxu0 0.0
    %202 = vmatpush1.msra.mxu0 %v198
    %203 = vmatprep.subr.mxu0 0.0
    %204 = vmatpush1.msra.mxu0 %v193
    %205 = vmatprep.subr.mxu0 0.0
    %206 = vmatpush1.msra.mxu0 %v188
    %207 = vmatprep.subr.mxu0 0.0
    %208 = vmatpush1.msra.mxu0 %v183
    %209 = vmatprep.subr.mxu0 0.0
    %210 = vmatpush1.msra.mxu0 %v178
    %211 = vmatprep.subr.mxu0 0.0
    %212 = vmatpush1.msra.mxu0 %v173
    %213 = vmatprep.subr.mxu0 0.0
    %214 = vmatpush1.msra.mxu0 %v168
    %215 = vmatprep.subr.mxu0 0.0
    %216 = vmatpush1.msra.mxu0 %v163
    %217 = vmatprep.subr.mxu0 0.0
    %218 = vmatpush1.msra.mxu0 %v158
    %219 = vmatprep.subr.mxu0 0.0
    %220 = vmatpush1.msra.mxu0 %v153
    %221 = vmatprep.subr.mxu0 0.0
    %222 = vmatpush1.msra.mxu0 %v148
    %223 = vmatprep.subr.mxu0 0.0
    %224 = vmatpush1.msra.mxu0 %v143
    %225 = vmatprep.subr.mxu0 0.0
    %226 = vmatpush1.msra.mxu0 %v138
    %227 = vmatprep.subr.mxu0 0.0
    %228 = vmatpush1.msra.mxu0 %v133
    %229 = vmatprep.subr.mxu0 0.0
    %230 = vmatpush1.msra.mxu0 %v128
    %231 = vmatprep.subr.mxu0 0.0
    %232 = vmatpush1.msra.mxu0 %v123
    %233 = vmatprep.subr.mxu0 0.0
    %234 = vmatpush2.msra.mxu0 0.0
    %235 = vmatprep.subr.mxu0 0.0
    %236 = vmatpush2.msra.mxu0 0.0
    %237 = vmatprep.subr.mxu0 0.0
    %238 = vmatpush2.msra.mxu0 0.0
    %239 = vmatprep.subr.mxu0 0.0
    %240 = vmatpush2.msra.mxu0 0.0
    %241 = vmatprep.subr.mxu0 0.0
    %242 = vmatpush2.msra.mxu0 0.0
    %243 = vmatprep.subr.mxu0 0.0
    %244 = vmatpush2.msra.mxu0 0.0
    %245 = vmatprep.subr.mxu0 0.0
    %246 = vmatpush2.msra.mxu0 0.0
    %247 = vmatprep.subr.mxu0 0.0
    %248 = vmatpush2.msra.mxu0 0.0
    %249 = vmatprep.subr.mxu0 0.0
    %250 = vmatpush2.msra.mxu0 0.0
    %251 = vmatprep.subr.mxu0 0.0
    %252 = vmatpush2.msra.mxu0 0.0
    %253 = vmatprep.subr.mxu0 0.0
    %254 = vmatpush2.msra.mxu0 0.0
    %255 = vmatprep.subr.mxu0 0.0
    %256 = vmatpush2.msra.mxu0 0.0
    %257 = vmatprep.subr.mxu0 0.0
    %258 = vmatpush2.msra.mxu0 0.0
    %259 = vmatprep.subr.mxu0 0.0
    %260 = vmatpush2.msra.mxu0 0.0
    %261 = vmatprep.subr.mxu0 0.0
    %262 = vmatpush2.msra.mxu0 0.0
    %263 = vmatprep.subr.mxu0 0.0
    %264 = vmatpush2.msra.mxu0 0.0
    %265 = vmatprep.mubr.f32.mxu0 0.0
    %266 = vmatmul.mubr.f32.gmra.mxu0 %v123
    %v267 = vpop.f32.mrf.mxu0
    %v268 = vadd.f32 0.0, %v267
    %v269 = vpop.f32.mrf.mxu0
    %270 = vmatprep.mubr.f32.mxu0 0.0
    %271 = vmatmul.mubr.f32.gmra.mxu0 %v128
    %v272 = vpop.f32.mrf.mxu0
    %v273 = vadd.f32 0.0, %v272
    %v274 = vpop.f32.mrf.mxu0
    %275 = vmatprep.mubr.f32.mxu0 0.0
    %276 = vmatmul.mubr.f32.gmra.mxu0 %v133
    %v277 = vpop.f32.mrf.mxu0
    %v278 = vadd.f32 0.0, %v277
    %v279 = vpop.f32.mrf.mxu0
    %280 = vmatprep.mubr.f32.mxu0 0.0
    %281 = vmatmul.mubr.f32.gmra.mxu0 %v138
    %v282 = vpop.f32.mrf.mxu0
    %v283 = vadd.f32 0.0, %v282
    %v284 = vpop.f32.mrf.mxu0
    %285 = vmatprep.mubr.f32.mxu0 0.0
    %286 = vmatmul.mubr.f32.gmra.mxu0 %v143
    %v287 = vpop.f32.mrf.mxu0
    %v288 = vadd.f32 0.0, %v287
    %v289 = vpop.f32.mrf.mxu0
    %290 = vmatprep.mubr.f32.mxu0 0.0
    %291 = vmatmul.mubr.f32.gmra.mxu0 %v148
    %v292 = vpop.f32.mrf.mxu0
    %v293 = vadd.f32 0.0, %v292
    %v294 = vpop.f32.mrf.mxu0
    %295 = vmatprep.mubr.f32.mxu0 0.0
    %296 = vmatmul.mubr.f32.gmra.mxu0 %v153
    %v297 = vpop.f32.mrf.mxu0
    %v298 = vadd.f32 0.0, %v297
    %v299 = vpop.f32.mrf.mxu0
    %300 = vmatprep.mubr.f32.mxu0 0.0
    %301 = vmatmul.mubr.f32.gmra.mxu0 %v158
    %v302 = vpop.f32.mrf.mxu0
    %v303 = vadd.f32 0.0, %v302
    %v304 = vpop.f32.mrf.mxu0
    %305 = vmatprep.mubr.f32.mxu0 0.0
    %306 = vmatmul.mubr.f32.gmra.mxu0 %v163
    %v307 = vpop.f32.mrf.mxu0
    %v308 = vadd.f32 0.0, %v307
    %v309 = vpop.f32.mrf.mxu0
    %310 = vmatprep.mubr.f32.mxu0 0.0
    %311 = vmatmul.mubr.f32.gmra.mxu0 %v168
    %v312 = vpop.f32.mrf.mxu0
    %v313 = vadd.f32 0.0, %v312
    %v314 = vpop.f32.mrf.mxu0
    %315 = vmatprep.mubr.f32.mxu0 0.0
    %316 = vmatmul.mubr.f32.gmra.mxu0 %v173
    %v317 = vpop.f32.mrf.mxu0
    %v318 = vadd.f32 0.0, %v317
    %v319 = vpop.f32.mrf.mxu0
    %320 = vmatprep.mubr.f32.mxu0 0.0
    %321 = vmatmul.mubr.f32.gmra.mxu0 %v178
    %v322 = vpop.f32.mrf.mxu0
    %v323 = vadd.f32 0.0, %v322
    %v324 = vpop.f32.mrf.mxu0
    %325 = vmatprep.mubr.f32.mxu0 0.0
    %326 = vmatmul.mubr.f32.gmra.mxu0 %v183
    %v327 = vpop.f32.mrf.mxu0
    %v328 = vadd.f32 0.0, %v327
    %v329 = vpop.f32.mrf.mxu0
    %330 = vmatprep.mubr.f32.mxu0 0.0
    %331 = vmatmul.mubr.f32.gmra.mxu0 %v188
    %v332 = vpop.f32.mrf.mxu0
    %v333 = vadd.f32 0.0, %v332
    %v334 = vpop.f32.mrf.mxu0
    %335 = vmatprep.mubr.f32.mxu0 0.0
    %336 = vmatmul.mubr.f32.gmra.mxu0 %v193
    %v337 = vpop.f32.mrf.mxu0
    %v338 = vadd.f32 0.0, %v337
    %v339 = vpop.f32.mrf.mxu0
    %340 = vmatprep.mubr.f32.mxu0 0.0
    %341 = vmatmul.mubr.f32.gmra.mxu0 %v198
    %v342 = vpop.f32.mrf.mxu0
    %v343 = vadd.f32 0.0, %v342
    %v344 = vpop.f32.mrf.mxu0
    %345 = vdwg.mxu0
    %346 = vmatprep.subr.mxu0 0.0
    %347 = vmatpush1.msra.mxu0 %v343
    %348 = vmatprep.subr.mxu0 0.0
    %349 = vmatpush1.msra.mxu0 %v338
    %350 = vmatprep.subr.mxu0 0.0
    %351 = vmatpush1.msra.mxu0 %v333
    %352 = vmatprep.subr.mxu0 0.0
    %353 = vmatpush1.msra.mxu0 %v328
    %354 = vmatprep.subr.mxu0 0.0
    %355 = vmatpush1.msra.mxu0 %v323
    %356 = vmatprep.subr.mxu0 0.0
    %357 = vmatpush1.msra.mxu0 %v318
    %358 = vmatprep.subr.mxu0 0.0
    %359 = vmatpush1.msra.mxu0 %v313
    %360 = vmatprep.subr.mxu0 0.0
    %361 = vmatpush1.msra.mxu0 %v308
    %362 = vmatprep.subr.mxu0 0.0
    %363 = vmatpush1.msra.mxu0 %v303
    %364 = vmatprep.subr.mxu0 0.0
    %365 = vmatpush1.msra.mxu0 %v298
    %366 = vmatprep.subr.mxu0 0.0
    %367 = vmatpush1.msra.mxu0 %v293
    %368 = vmatprep.subr.mxu0 0.0
    %369 = vmatpush1.msra.mxu0 %v288
    %370 = vmatprep.subr.mxu0 0.0
    %371 = vmatpush1.msra.mxu0 %v283
    %372 = vmatprep.subr.mxu0 0.0
    %373 = vmatpush1.msra.mxu0 %v278
    %374 = vmatprep.subr.mxu0 0.0
    %375 = vmatpush1.msra.mxu0 %v273
    %376 = vmatprep.subr.mxu0 0.0
    %377 = vmatpush1.msra.mxu0 %v268
    %378 = vmatprep.subr.mxu0 0.0
    %379 = vmatpush2.msra.mxu0 0.0
    %380 = vmatprep.subr.mxu0 0.0
    %381 = vmatpush2.msra.mxu0 0.0
    %382 = vmatprep.subr.mxu0 0.0
    %383 = vmatpush2.msra.mxu0 0.0
    %384 = vmatprep.subr.mxu0 0.0
    %385 = vmatpush2.msra.mxu0 0.0
    %386 = vmatprep.subr.mxu0 0.0
    %387 = vmatpush2.msra.mxu0 0.0
    %388 = vmatprep.subr.mxu0 0.0
    %389 = vmatpush2.msra.mxu0 0.0
    %390 = vmatprep.subr.mxu0 0.0
    %391 = vmatpush2.msra.mxu0 0.0
    %392 = vmatprep.subr.mxu0 0.0
    %393 = vmatpush2.msra.mxu0 0.0
    %394 = vmatprep.subr.mxu0 0.0
    %395 = vmatpush2.msra.mxu0 0.0
    %396 = vmatprep.subr.mxu0 0.0
    %397 = vmatpush2.msra.mxu0 0.0
    %398 = vmatprep.subr.mxu0 0.0
    %399 = vmatpush2.msra.mxu0 0.0
    %400 = vmatprep.subr.mxu0 0.0
    %401 = vmatpush2.msra.mxu0 0.0
    %402 = vmatprep.subr.mxu0 0.0
    %403 = vmatpush2.msra.mxu0 0.0
    %404 = vmatprep.subr.mxu0 0.0
    %405 = vmatpush2.msra.mxu0 0.0
    %406 = vmatprep.subr.mxu0 0.0
    %407 = vmatpush2.msra.mxu0 0.0
    %408 = vmatprep.subr.mxu0 0.0
    %409 = vmatpush2.msra.mxu0 0.0
    %410 = vmatprep.mubr.f32.mxu0 0.0
    %411 = vmatmul.mubr.f32.gmra.mxu0 %v268
    %v412 = vpop.f32.mrf.mxu0
    %v413 = vadd.f32 0.0, %v412
    %v414 = vpop.f32.mrf.mxu0
    %415 = vmatprep.mubr.f32.mxu0 0.0
    %416 = vmatmul.mubr.f32.gmra.mxu0 %v273
    %v417 = vpop.f32.mrf.mxu0
    %v418 = vadd.f32 0.0, %v417
    %v419 = vpop.f32.mrf.mxu0
    %420 = vmatprep.mubr.f32.mxu0 0.0
    %421 = vmatmul.mubr.f32.gmra.mxu0 %v278
    %v422 = vpop.f32.mrf.mxu0
    %v423 = vadd.f32 0.0, %v422
    %v424 = vpop.f32.mrf.mxu0
    %425 = vmatprep.mubr.f32.mxu0 0.0
    %426 = vmatmul.mubr.f32.gmra.mxu0 %v283
    %v427 = vpop.f32.mrf.mxu0
    %v428 = vadd.f32 0.0, %v427
    %v429 = vpop.f32.mrf.mxu0
    %430 = vmatprep.mubr.f32.mxu0 0.0
    %431 = vmatmul.mubr.f32.gmra.mxu0 %v288
    %v432 = vpop.f32.mrf.mxu0
    %v433 = vadd.f32 0.0, %v432
    %v434 = vpop.f32.mrf.mxu0
    %435 = vmatprep.mubr.f32.mxu0 0.0
    %436 = vmatmul.mubr.f32.gmra.mxu0 %v293
    %v437 = vpop.f32.mrf.mxu0
    %v438 = vadd.f32 0.0, %v437
    %v439 = vpop.f32.mrf.mxu0
    %440 = vmatprep.mubr.f32.mxu0 0.0
    %441 = vmatmul.mubr.f32.gmra.mxu0 %v298
    %v442 = vpop.f32.mrf.mxu0
    %v443 = vadd.f32 0.0, %v442
    %v444 = vpop.f32.mrf.mxu0
    %445 = vmatprep.mubr.f32.mxu0 0.0
    %446 = vmatmul.mubr.f32.gmra.mxu0 %v303
    %v447 = vpop.f32.mrf.mxu0
    %v448 = vadd.f32 0.0, %v447
    %v449 = vpop.f32.mrf.mxu0
    %450 = vmatprep.mubr.f32.mxu0 0.0
    %451 = vmatmul.mubr.f32.gmra.mxu0 %v308
    %v452 = vpop.f32.mrf.mxu0
    %v453 = vadd.f32 0.0, %v452
    %v454 = vpop.f32.mrf.mxu0
    %455 = vmatprep.mubr.f32.mxu0 0.0
    %456 = vmatmul.mubr.f32.gmra.mxu0 %v313
    %v457 = vpop.f32.mrf.mxu0
    %v458 = vadd.f32 0.0, %v457
    %v459 = vpop.f32.mrf.mxu0
    %460 = vmatprep.mubr.f32.mxu0 0.0
    %461 = vmatmul.mubr.f32.gmra.mxu0 %v318
    %v462 = vpop.f32.mrf.mxu0
    %v463 = vadd.f32 0.0, %v462
    %v464 = vpop.f32.mrf.mxu0
    %465 = vmatprep.mubr.f32.mxu0 0.0
    %466 = vmatmul.mubr.f32.gmra.mxu0 %v323
    %v467 = vpop.f32.mrf.mxu0
    %v468 = vadd.f32 0.0, %v467
    %v469 = vpop.f32.mrf.mxu0
    %470 = vmatprep.mubr.f32.mxu0 0.0
    %471 = vmatmul.mubr.f32.gmra.mxu0 %v328
    %v472 = vpop.f32.mrf.mxu0
    %v473 = vadd.f32 0.0, %v472
    %v474 = vpop.f32.mrf.mxu0
    %475 = vmatprep.mubr.f32.mxu0 0.0
    %476 = vmatmul.mubr.f32.gmra.mxu0 %v333
    %v477 = vpop.f32.mrf.mxu0
    %v478 = vadd.f32 0.0, %v477
    %v479 = vpop.f32.mrf.mxu0
    %480 = vmatprep.mubr.f32.mxu0 0.0
    %481 = vmatmul.mubr.f32.gmra.mxu0 %v338
    %v482 = vpop.f32.mrf.mxu0
    %v483 = vadd.f32 0.0, %v482
    %v484 = vpop.f32.mrf.mxu0
    %485 = vmatprep.mubr.f32.mxu0 0.0
    %486 = vmatmul.mubr.f32.gmra.mxu0 %v343
    %v487 = vpop.f32.mrf.mxu0
    %v488 = vadd.f32 0.0, %v487
    %v489 = vpop.f32.mrf.mxu0
    %490 = vdwg.mxu0
    %491 = vmatprep.subr.mxu0 0.0
    %492 = vmatpush1.msra.mxu0 %v488
    %493 = vmatprep.subr.mxu0 0.0
    %494 = vmatpush1.msra.mxu0 %v483
    %495 = vmatprep.subr.mxu0 0.0
    %496 = vmatpush1.msra.mxu0 %v478
    %497 = vmatprep.subr.mxu0 0.0
    %498 = vmatpush1.msra.mxu0 %v473
    %499 = vmatprep.subr.mxu0 0.0
    %500 = vmatpush1.msra.mxu0 %v468
    %501 = vmatprep.subr.mxu0 0.0
    %502 = vmatpush1.msra.mxu0 %v463
    %503 = vmatprep.subr.mxu0 0.0
    %504 = vmatpush1.msra.mxu0 %v458
    %505 = vmatprep.subr.mxu0 0.0
    %506 = vmatpush1.msra.mxu0 %v453
    %507 = vmatprep.subr.mxu0 0.0
    %508 = vmatpush1.msra.mxu0 %v448
    %509 = vmatprep.subr.mxu0 0.0
    %510 = vmatpush1.msra.mxu0 %v443
    %511 = vmatprep.subr.mxu0 0.0
    %512 = vmatpush1.msra.mxu0 %v438
    %513 = vmatprep.subr.mxu0 0.0
    %514 = vmatpush1.msra.mxu0 %v433
    %515 = vmatprep.subr.mxu0 0.0
    %516 = vmatpush1.msra.mxu0 %v428
    %517 = vmatprep.subr.mxu0 0.0
    %518 = vmatpush1.msra.mxu0 %v423
    %519 = vmatprep.subr.mxu0 0.0
    %520 = vmatpush1.msra.mxu0 %v418
    %521 = vmatprep.subr.mxu0 0.0
    %522 = vmatpush1.msra.mxu0 %v413
    %523 = vmatprep.subr.mxu0 0.0
    %524 = vmatpush2.msra.mxu0 0.0
    %525 = vmatprep.subr.mxu0 0.0
    %526 = vmatpush2.msra.mxu0 0.0
    %527 = vmatprep.subr.mxu0 0.0
    %528 = vmatpush2.msra.mxu0 0.0
    %529 = vmatprep.subr.mxu0 0.0
    %530 = vmatpush2.msra.mxu0 0.0
    %531 = vmatprep.subr.mxu0 0.0
    %532 = vmatpush2.msra.mxu0 0.0
    %533 = vmatprep.subr.mxu0 0.0
    %534 = vmatpush2.msra.mxu0 0.0
    %535 = vmatprep.subr.mxu0 0.0
    %536 = vmatpush2.msra.mxu0 0.0
    %537 = vmatprep.subr.mxu0 0.0
    %538 = vmatpush2.msra.mxu0 0.0
    %539 = vmatprep.subr.mxu0 0.0
    %540 = vmatpush2.msra.mxu0 0.0
    %541 = vmatprep.subr.mxu0 0.0
    %542 = vmatpush2.msra.mxu0 0.0
    %543 = vmatprep.subr.mxu0 0.0
    %544 = vmatpush2.msra.mxu0 0.0
    %545 = vmatprep.subr.mxu0 0.0
    %546 = vmatpush2.msra.mxu0 0.0
    %547 = vmatprep.subr.mxu0 0.0
    %548 = vmatpush2.msra.mxu0 0.0
    %549 = vmatprep.subr.mxu0 0.0
    %550 = vmatpush2.msra.mxu0 0.0
    %551 = vmatprep.subr.mxu0 0.0
    %552 = vmatpush2.msra.mxu0 0.0
    %553 = vmatprep.subr.mxu0 0.0
    %554 = vmatpush2.msra.mxu0 0.0
    %555 = vmatprep.mubr.f32.mxu0 0.0
    %556 = vmatmul.mubr.f32.gmra.mxu0 %v123
    %v557 = vpop.f32.mrf.mxu0
    %v558 = vadd.f32 0.0, %v557
    %v559 = vpop.f32.mrf.mxu0
    %560 = vmatprep.mubr.f32.mxu0 0.0
    %561 = vmatmul.mubr.f32.gmra.mxu0 %v128
    %v562 = vpop.f32.mrf.mxu0
    %v563 = vadd.f32 0.0, %v562
    %v564 = vpop.f32.mrf.mxu0
    %565 = vmatprep.mubr.f32.mxu0 0.0
    %566 = vmatmul.mubr.f32.gmra.mxu0 %v133
    %v567 = vpop.f32.mrf.mxu0
    %v568 = vadd.f32 0.0, %v567
    %v569 = vpop.f32.mrf.mxu0
    %570 = vmatprep.mubr.f32.mxu0 0.0
    %571 = vmatmul.mubr.f32.gmra.mxu0 %v138
    %v572 = vpop.f32.mrf.mxu0
    %v573 = vadd.f32 0.0, %v572
    %v574 = vpop.f32.mrf.mxu0
    %575 = vmatprep.mubr.f32.mxu0 0.0
    %576 = vmatmul.mubr.f32.gmra.mxu0 %v143
    %v577 = vpop.f32.mrf.mxu0
    %v578 = vadd.f32 0.0, %v577
    %v579 = vpop.f32.mrf.mxu0
    %580 = vmatprep.mubr.f32.mxu0 0.0
    %581 = vmatmul.mubr.f32.gmra.mxu0 %v148
    %v582 = vpop.f32.mrf.mxu0
    %v583 = vadd.f32 0.0, %v582
    %v584 = vpop.f32.mrf.mxu0
    %585 = vmatprep.mubr.f32.mxu0 0.0
    %586 = vmatmul.mubr.f32.gmra.mxu0 %v153
    %v587 = vpop.f32.mrf.mxu0
    %v588 = vadd.f32 0.0, %v587
    %v589 = vpop.f32.mrf.mxu0
    %590 = vmatprep.mubr.f32.mxu0 0.0
    %591 = vmatmul.mubr.f32.gmra.mxu0 %v158
    %v592 = vpop.f32.mrf.mxu0
    %v593 = vadd.f32 0.0, %v592
    %v594 = vpop.f32.mrf.mxu0
    %595 = vmatprep.mubr.f32.mxu0 0.0
    %596 = vmatmul.mubr.f32.gmra.mxu0 %v163
    %v597 = vpop.f32.mrf.mxu0
    %v598 = vadd.f32 0.0, %v597
    %v599 = vpop.f32.mrf.mxu0
    %600 = vmatprep.mubr.f32.mxu0 0.0
    %601 = vmatmul.mubr.f32.gmra.mxu0 %v168
    %v602 = vpop.f32.mrf.mxu0
    %v603 = vadd.f32 0.0, %v602
    %v604 = vpop.f32.mrf.mxu0
    %605 = vmatprep.mubr.f32.mxu0 0.0
    %606 = vmatmul.mubr.f32.gmra.mxu0 %v173
    %v607 = vpop.f32.mrf.mxu0
    %v608 = vadd.f32 0.0, %v607
    %v609 = vpop.f32.mrf.mxu0
    %610 = vmatprep.mubr.f32.mxu0 0.0
    %611 = vmatmul.mubr.f32.gmra.mxu0 %v178
    %v612 = vpop.f32.mrf.mxu0
    %v613 = vadd.f32 0.0, %v612
    %v614 = vpop.f32.mrf.mxu0
    %615 = vmatprep.mubr.f32.mxu0 0.0
    %616 = vmatmul.mubr.f32.gmra.mxu0 %v183
    %v617 = vpop.f32.mrf.mxu0
    %v618 = vadd.f32 0.0, %v617
    %v619 = vpop.f32.mrf.mxu0
    %620 = vmatprep.mubr.f32.mxu0 0.0
    %621 = vmatmul.mubr.f32.gmra.mxu0 %v188
    %v622 = vpop.f32.mrf.mxu0
    %v623 = vadd.f32 0.0, %v622
    %v624 = vpop.f32.mrf.mxu0
    %625 = vmatprep.mubr.f32.mxu0 0.0
    %626 = vmatmul.mubr.f32.gmra.mxu0 %v193
    %v627 = vpop.f32.mrf.mxu0
    %v628 = vadd.f32 0.0, %v627
    %v629 = vpop.f32.mrf.mxu0
    %630 = vmatprep.mubr.f32.mxu0 0.0
    %631 = vmatmul.mubr.f32.gmra.mxu0 %v198
    %v632 = vpop.f32.mrf.mxu0
    %v633 = vadd.f32 0.0, %v632
    %v634 = vpop.f32.mrf.mxu0
    %635 = vdwg.mxu0
    %v636 = vld [vmem:[#allocation2] sm:$0xff]
    %v637 = vld [vmem:[#allocation2 + $0x8] sm:$0xff]
    %638 = vmatprep.subr.mxu0 0.0
    %639 = vmatpush1.msra.mxu0 %v633
    %640 = vmatprep.subr.mxu0 0.0
    %641 = vmatpush1.msra.mxu0 %v628
    %642 = vmatprep.subr.mxu0 0.0
    %643 = vmatpush1.msra.mxu0 %v623
    %644 = vmatprep.subr.mxu0 0.0
    %645 = vmatpush1.msra.mxu0 %v618
    %646 = vmatprep.subr.mxu0 0.0
    %647 = vmatpush1.msra.mxu0 %v613
    %648 = vmatprep.subr.mxu0 0.0
    %649 = vmatpush1.msra.mxu0 %v608
    %650 = vmatprep.subr.mxu0 0.0
    %651 = vmatpush1.msra.mxu0 %v603
    %652 = vmatprep.subr.mxu0 0.0
    %653 = vmatpush1.msra.mxu0 %v598
    %654 = vmatprep.subr.mxu0 0.0
    %655 = vmatpush1.msra.mxu0 %v593
    %656 = vmatprep.subr.mxu0 0.0
    %657 = vmatpush1.msra.mxu0 %v588
    %658 = vmatprep.subr.mxu0 0.0
    %659 = vmatpush1.msra.mxu0 %v583
    %660 = vmatprep.subr.mxu0 0.0
    %661 = vmatpush1.msra.mxu0 %v578
    %662 = vmatprep.subr.mxu0 0.0
    %663 = vmatpush1.msra.mxu0 %v573
    %664 = vmatprep.subr.mxu0 0.0
    %665 = vmatpush1.msra.mxu0 %v568
    %666 = vmatprep.subr.mxu0 0.0
    %667 = vmatpush1.msra.mxu0 %v563
    %668 = vmatprep.subr.mxu0 0.0
    %669 = vmatpush1.msra.mxu0 %v558
    %670 = vmatprep.subr.mxu0 0.0
    %671 = vmatpush2.msra.mxu0 0.0
    %672 = vmatprep.subr.mxu0 0.0
    %673 = vmatpush2.msra.mxu0 0.0
    %674 = vmatprep.subr.mxu0 0.0
    %675 = vmatpush2.msra.mxu0 0.0
    %676 = vmatprep.subr.mxu0 0.0
    %677 = vmatpush2.msra.mxu0 0.0
    %678 = vmatprep.subr.mxu0 0.0
    %679 = vmatpush2.msra.mxu0 0.0
    %680 = vmatprep.subr.mxu0 0.0
    %681 = vmatpush2.msra.mxu0 0.0
    %682 = vmatprep.subr.mxu0 0.0
    %683 = vmatpush2.msra.mxu0 0.0
    %684 = vmatprep.subr.mxu0 0.0
    %685 = vmatpush2.msra.mxu0 0.0
    %686 = vmatprep.subr.mxu0 0.0
    %687 = vmatpush2.msra.mxu0 0.0
    %688 = vmatprep.subr.mxu0 0.0
    %689 = vmatpush2.msra.mxu0 0.0
    %690 = vmatprep.subr.mxu0 0.0
    %691 = vmatpush2.msra.mxu0 0.0
    %692 = vmatprep.subr.mxu0 0.0
    %693 = vmatpush2.msra.mxu0 0.0
    %694 = vmatprep.subr.mxu0 0.0
    %695 = vmatpush2.msra.mxu0 0.0
    %696 = vmatprep.subr.mxu0 0.0
    %697 = vmatpush2.msra.mxu0 0.0
    %698 = vmatprep.subr.mxu0 0.0
    %699 = vmatpush2.msra.mxu0 0.0
    %700 = vmatprep.subr.mxu0 0.0
    %701 = vmatpush2.msra.mxu0 0.0
    %702 = vmatprep.mubr.f32.mxu0 0.0
    %703 = vmatmul.mubr.f32.gmra.mxu0 %v636
    %v704 = vpop.f32.mrf.mxu0
    %v705 = vadd.f32 0.0, %v704
    %v706 = vpop.f32.mrf.mxu0
    %707 = vmatprep.mubr.f32.mxu0 0.0
    %708 = vmatmul.mubr.f32.gmra.mxu0 %v637
    %v709 = vpop.f32.mrf.mxu0
    %v710 = vadd.f32 0.0, %v709
    %v711 = vpop.f32.mrf.mxu0
    %712 = vdwg.mxu0
    %713 = vst [vmem:[#allocation7] sm:$0xff] %v705
    %714 = vst [vmem:[#allocation7 + $0x8] sm:$0xff] %v710
    // Predicated region
    $region18: #{tpu_custom_call.1} parent=1 // pred_check
      _
    $region19: #{tpu_custom_call.1} parent=1 // pred_check_branch
      %716 = sbr.rel (0) target = $region21
    $region20: #{tpu_custom_call.1} parent=1 // pred_region
      %s718 = ssub.s32 256, 256
      %719 = vsyncadd [#allocation4], %s718
      %s720 = sshll.u32 [#allocation7], 4
      %s721 = int_to_ptr.vmem [resolvable:$true] %s720
      %726 = dma.vmem_to_hbm [thread:$0]  %s721, 256, %s2, [#allocation4], 128, 128, 8
    $region21: #{tpu_custom_call.1} parent=1 // pred_fallthru
      _
    // Predicated region
    $region22: #{tpu_custom_call.1} parent=1 // pred_check
      _
    $region23: #{tpu_custom_call.1} parent=1 // pred_check_branch
      %728 = sbr.rel (0) target = $region25
    $region24: #{tpu_custom_call.1} parent=1 // pred_region
      %729 = dma.done [#allocation4], 256
    $region25: #{tpu_custom_call.1} parent=1 // pred_fallthru
      _
    %730 = vsyncpa [#allocation3], 1
    %731 = vsyncpa [#allocation6], 1
    %732 = vsyncpa [#allocation4], 1

</llo_original>
